<compile_context>
chip_gen: v7x
topology: tpu7x:2x2x1
jax: 0.10.0
libtpu: 0.0.40
codegen_flags: <defaults>
</compile_context>

<pallas_src>
import jax
import jax.numpy as jnp
from jax.experimental import pallas as pl
from jax.experimental.pallas import tpu as pltpu


def _round_up(v, m):
    return m * ((v + m - 1) // m)


def _mlp_relu_sq_kernel(x_ref, w1_ref, w2_ref, o_ref, acc_ref):
    # x_ref: (tm, D)   w1_ref: (D, tH)   w2_ref: (tH, D)   o_ref: (tm, D)
    # acc_ref: (tm, D) f32 scratch, resident across the H (k) grid axis.
    k = pl.program_id(1)

    # fc1 tile: native-dtype (bf16) operands into the MXU, f32 accumulate.
    h = jnp.dot(x_ref[...], w1_ref[...], preferred_element_type=jnp.float32)
    h = jnp.maximum(h, 0.0)
    h = h * h
    # fc2 tile: cast activation back to the weight dtype so the second matmul
    # also runs at native MXU rate; partial output accumulated in f32.
    partial = jnp.dot(h.astype(w2_ref.dtype), w2_ref[...],
                      preferred_element_type=jnp.float32)

    # First k step: store directly (saves the zero-fill + acc read/add).
    @pl.when(k == 0)
    def _():
        acc_ref[...] = partial

    @pl.when(k > 0)
    def _():
        acc_ref[...] += partial

    @pl.when(k == pl.num_programs(1) - 1)
    def _():
        o_ref[...] = acc_ref[...].astype(o_ref.dtype)


def mlp_relu_squared(x, w1_t, w2_t):
    """Fused MLPReluSquared forward.

    x:    [..., D]  activations (any leading shape)
    w1_t: [D, H]    fc1 weight, pre-transposed (nn.Linear stores [H, D])
    w2_t: [H, D]    fc2 weight, pre-transposed
    returns [..., D] in x.dtype
    """
    orig_shape = x.shape
    D = orig_shape[-1]
    x2d = x.reshape(-1, D)
    M = x2d.shape[0]
    Dw, H = w1_t.shape
    assert Dw == D and w2_t.shape == (H, D)

    x_bytes = jnp.dtype(x.dtype).itemsize
    w_bytes = jnp.dtype(w1_t.dtype).itemsize

    # ---- per-generation hardware budget ------------------------------------
    try:
        vmem_cap = int(pltpu.get_tpu_info().vmem_capacity_bytes)
    except Exception:  # pragma: no cover - conservative fallback
        vmem_cap = 128 * 1024 * 1024
    small_vmem = vmem_cap <= 80 * 1024 * 1024          # v7x-like: 64 MiB, 2 TC/chip
    if small_vmem:
        vmem_budget = min(vmem_cap - 8 * 1024 * 1024, 56 * 1024 * 1024)
        tm_target = 512        # clears v7x's ~310 FLOPs/byte compute/BW balance
        min_m_tiles = 2        # keep both TensorCores busy on the parallel axis
    else:
        vmem_budget = min(vmem_cap - 28 * 1024 * 1024, 100 * 1024 * 1024)
        tm_target = 1024       # clears v6e's ~650 FLOPs/byte balance
        min_m_tiles = 1

    # Row alignment: bf16 packs 16 rows per sublane tile, int8/fp8 pack 32.
    row_align = {1: 32, 2: 16}.get(x_bytes, 8)

    # ---- M tiling ------------------------------------------------------------
    if M >= tm_target * min_m_tiles:
        tile_m = tm_target
    else:
        m_rows = _round_up(max(M, row_align), row_align)
        tile_m = _round_up(-(-m_rows // min_m_tiles), row_align)   # ceil-div
    tile_m = max(tile_m, row_align)

    # ---- VMEM-budget-driven hidden tile --------------------------------------
    def row_bytes(tm, th):
        # x + o (double-buffered), f32 accumulator, and the (tm, th)
        # relu/square intermediate (f32 result + its weight-dtype cast).
        return 4 * tm * D * x_bytes + tm * D * 4 + tm * th * (4 + w_bytes)

    def weight_bytes(th):
        # W1 (D, th) and W2 (th, D) tiles, double-buffered.
        return 4 * D * th * w_bytes

    h_candidates = [th for th in range(H, 0, -128) if H % th == 0]
    if not h_candidates:
        h_candidates = [H]

    tile_h = None
    while True:
        for th in h_candidates:
            if row_bytes(tile_m, th) + weight_bytes(th) <= vmem_budget:
                tile_h = th
                break
        if tile_h is not None or tile_m <= row_align:
            break
        tile_m = max(row_align, _round_up(tile_m // 2, row_align))
    if tile_h is None:          # pathological shapes: smallest hidden tile
        tile_h = h_candidates[-1]

    m_pad = _round_up(max(M, row_align), tile_m)
    if m_pad != M:
        # Zero row padding is exact: relu(0)^2 @ W2 == 0.
        x2d = jnp.pad(x2d, ((0, m_pad - M), (0, 0)))

    num_m = m_pad // tile_m
    num_k = H // tile_h
    grid = (num_m, num_k)

    # ---- compiler hints -------------------------------------------------------
    est_vmem = row_bytes(tile_m, tile_h) + weight_bytes(tile_h)
    vmem_limit = int(min(vmem_cap, max(vmem_budget, est_vmem + 4 * 1024 * 1024)))

    # Weights are re-streamed once per M tile only when the k axis has >1 step;
    # with tile_h == H the constant block index keeps them resident.
    weight_passes = num_m if num_k > 1 else 1
    cost = pl.CostEstimate(
        flops=4 * m_pad * D * H,              # 2*M*D*H per matmul, two matmuls
        transcendentals=0,
        bytes_accessed=int(weight_passes * 2 * D * H * w_bytes
                           + 2 * m_pad * D * x_bytes),
    )

    out = pl.pallas_call(
        _mlp_relu_sq_kernel,
        out_shape=jax.ShapeDtypeStruct((m_pad, D), x.dtype),
        grid_spec=pltpu.PrefetchScalarGridSpec(
            num_scalar_prefetch=0,
            grid=grid,
            in_specs=[
                pl.BlockSpec((tile_m, D), lambda i, k: (i, 0)),   # x row tile
                pl.BlockSpec((D, tile_h), lambda i, k: (0, k)),   # W1 col tile
                pl.BlockSpec((tile_h, D), lambda i, k: (k, 0)),   # W2 row tile
            ],
            out_specs=pl.BlockSpec((tile_m, D), lambda i, k: (i, 0)),
            scratch_shapes=[pltpu.VMEM((tile_m, D), jnp.float32)],
        ),
        compiler_params=pltpu.CompilerParams(
            dimension_semantics=("parallel", "arbitrary"),
            vmem_limit_bytes=vmem_limit,
        ),
        cost_estimate=cost,
    )(x2d, w1_t, w2_t)

    if m_pad != M:
        out = out[:M]
    return out.reshape(orig_shape)


if __name__ == "__main__":
    # Module hyper-params (small, consistent with the PyTorch forward).
    batch, seq = 2, 8
    dim = 128
    hidden_dim_raw = 200
    multiple_of = 256
    hidden_dim = _round_up(hidden_dim_raw, multiple_of)   # -> 256

    key = jax.random.PRNGKey(0)
    kx, k1, k2 = jax.random.split(key, 3)

    # bf16 storage: MXU-native feeds, half the HBM->VMEM traffic.
    x = jax.random.normal(kx, (batch, seq, dim), dtype=jnp.float32).astype(jnp.bfloat16)
    # nn.Linear weights are [out, in]; the kernel takes them transposed ([in, out]).
    w1 = (jax.random.normal(k1, (hidden_dim, dim), dtype=jnp.float32) * 0.02
          ).astype(jnp.bfloat16)
    w2 = (jax.random.normal(k2, (dim, hidden_dim), dtype=jnp.float32) * 0.02
          ).astype(jnp.bfloat16)

    out = mlp_relu_squared(x, w1.T, w2.T)
    jax.block_until_ready(out)

    # Pure-JAX reference on the same math path (bf16 MXU feeds, f32 accumulate).
    x2d = x.reshape(batch * seq, dim)
    h_ref = jnp.maximum(
        jnp.dot(x2d, w1.T, preferred_element_type=jnp.float32), 0.0) ** 2
    ref = jnp.dot(h_ref.astype(jnp.bfloat16), w2.T,
                  preferred_element_type=jnp.float32).astype(x.dtype)
    ref = ref.reshape(batch, seq, dim)

    assert jnp.allclose(out.astype(jnp.float32), ref.astype(jnp.float32),
                        atol=2e-2, rtol=2e-2), "mismatch vs reference"

    print("KERNEL_OK")
</pallas_src>

<mosaic_0001>
module attributes {stable_mosaic.version = 11 : i64} {
  func.func @_mlp_relu_sq_kernel(%arg0: i32, %arg1: i32, %arg2: memref<16x128xbf16, #tpu.memory_space<vmem>>, %arg3: memref<128x256xbf16, #tpu.memory_space<vmem>>, %arg4: memref<256x128xbf16, #tpu.memory_space<vmem>>, %arg5: memref<16x128xbf16, #tpu.memory_space<vmem>>, %arg6: memref<16x128xf32, #tpu.memory_space<vmem>>) attributes {dimension_semantics = [#tpu.dimension_semantics<parallel>, #tpu.dimension_semantics<arbitrary>], iteration_bounds = array<i64: 1, 1>, scalar_prefetch = 0 : i64, scratch_operands = 1 : i64, tpu.core_type = #tpu.core_type<tc>, window_params = [{transform_indices = @transform_0, window_bounds = array<i64: 16, 128>}, {transform_indices = @transform_1, window_bounds = array<i64: 128, 256>}, {transform_indices = @transform_2, window_bounds = array<i64: 256, 128>}, {transform_indices = @transform_3, window_bounds = array<i64: 16, 128>}]} {
    %c0 = arith.constant 0 : index
    %c0_0 = arith.constant 0 : index
    %0 = vector.load %arg2[%c0, %c0_0] : memref<16x128xbf16, #tpu.memory_space<vmem>>, vector<16x128xbf16>
    %c0_1 = arith.constant 0 : index
    %c0_2 = arith.constant 0 : index
    %1 = vector.load %arg3[%c0_1, %c0_2] : memref<128x256xbf16, #tpu.memory_space<vmem>>, vector<128x256xbf16>
    %cst = arith.constant dense<0.000000e+00> : vector<16x256xf32>
    %2 = tpu.matmul %0, %1, %cst {dimension_numbers = #tpu.dot_dimension_numbers<[1], [0], [0], [1], [0, 0, 1, 1], [], []>} : vector<16x128xbf16>, vector<128x256xbf16>, vector<16x256xf32> -> vector<16x256xf32>
    %cst_3 = arith.constant 0.000000e+00 : f32
    %3 = vector.broadcast %cst_3 : f32 to vector<16x256xf32>
    %4 = arith.maximumf %2, %3 : vector<16x256xf32>
    %5 = arith.mulf %4, %4 : vector<16x256xf32>
    %6 = arith.truncf %5 : vector<16x256xf32> to vector<16x256xbf16>
    %c0_4 = arith.constant 0 : index
    %c0_5 = arith.constant 0 : index
    %7 = vector.load %arg4[%c0_4, %c0_5] : memref<256x128xbf16, #tpu.memory_space<vmem>>, vector<256x128xbf16>
    %cst_6 = arith.constant dense<0.000000e+00> : vector<16x128xf32>
    %8 = tpu.matmul %6, %7, %cst_6 {dimension_numbers = #tpu.dot_dimension_numbers<[1], [0], [0], [1], [0, 0, 1, 1], [], []>} : vector<16x256xbf16>, vector<256x128xbf16>, vector<16x128xf32> -> vector<16x128xf32>
    %c0_i32 = arith.constant 0 : i32
    %9 = arith.cmpi eq, %arg1, %c0_i32 : i32
    %10 = arith.extui %9 : i1 to i32
    %c0_i32_7 = arith.constant 0 : i32
    %11 = arith.cmpi ne, %10, %c0_i32_7 : i32
    scf.if %11 {
      %c0_12 = arith.constant 0 : index
      %c0_13 = arith.constant 0 : index
      %18 = vector.load %arg6[%c0_12, %c0_13] : memref<16x128xf32, #tpu.memory_space<vmem>>, vector<16x128xf32>
      tpu.vector_store %arg6[%c0_12, %c0_13], %8 {strides = array<i32>} : memref<16x128xf32, #tpu.memory_space<vmem>>, vector<16x128xf32>,
    } else {
    }
    %c0_i32_8 = arith.constant 0 : i32
    %12 = arith.cmpi sgt, %arg1, %c0_i32_8 : i32
    %13 = arith.extui %12 : i1 to i32
    %c0_i32_9 = arith.constant 0 : i32
    %14 = arith.cmpi ne, %13, %c0_i32_9 : i32
    scf.if %14 {
      %c0_12 = arith.constant 0 : index
      %c0_13 = arith.constant 0 : index
      %18 = vector.load %arg6[%c0_12, %c0_13] : memref<16x128xf32, #tpu.memory_space<vmem>>, vector<16x128xf32>
      %19 = arith.addf %18, %8 : vector<16x128xf32>
      %c0_14 = arith.constant 0 : index
      %c0_15 = arith.constant 0 : index
      %20 = vector.load %arg6[%c0_14, %c0_15] : memref<16x128xf32, #tpu.memory_space<vmem>>, vector<16x128xf32>
      tpu.vector_store %arg6[%c0_14, %c0_15], %19 {strides = array<i32>} : memref<16x128xf32, #tpu.memory_space<vmem>>, vector<16x128xf32>,
    } else {
    }
    %c0_i32_10 = arith.constant 0 : i32
    %15 = arith.cmpi eq, %arg1, %c0_i32_10 : i32
    %16 = arith.extui %15 : i1 to i32
    %c0_i32_11 = arith.constant 0 : i32
    %17 = arith.cmpi ne, %16, %c0_i32_11 : i32
    scf.if %17 {
      %c0_12 = arith.constant 0 : index
      %c0_13 = arith.constant 0 : index
      %18 = vector.load %arg6[%c0_12, %c0_13] : memref<16x128xf32, #tpu.memory_space<vmem>>, vector<16x128xf32>
      %19 = arith.truncf %18 : vector<16x128xf32> to vector<16x128xbf16>
      %c0_14 = arith.constant 0 : index
      %c0_15 = arith.constant 0 : index
      %20 = vector.load %arg5[%c0_14, %c0_15] : memref<16x128xbf16, #tpu.memory_space<vmem>>, vector<16x128xbf16>
      tpu.vector_store %arg5[%c0_14, %c0_15], %19 {strides = array<i32>} : memref<16x128xbf16, #tpu.memory_space<vmem>>, vector<16x128xbf16>,
    } else {
    }
    return
  }
  func.func @transform_0(%arg0: i32, %arg1: i32) -> (i32, i32) {
    %c0_i32 = arith.constant 0 : i32
    %c0_i32_0 = arith.constant 0 : i32
    return %arg0, %c0_i32 : i32, i32
  }
  func.func @transform_1(%arg0: i32, %arg1: i32) -> (i32, i32) {
    %c0_i32 = arith.constant 0 : i32
    %c0_i32_0 = arith.constant 0 : i32
    return %c0_i32, %arg1 : i32, i32
  }
  func.func @transform_2(%arg0: i32, %arg1: i32) -> (i32, i32) {
    %c0_i32 = arith.constant 0 : i32
    %c0_i32_0 = arith.constant 0 : i32
    return %arg1, %c0_i32 : i32, i32
  }
  func.func @transform_3(%arg0: i32, %arg1: i32) -> (i32, i32) {
    %c0_i32 = arith.constant 0 : i32
    %c0_i32_0 = arith.constant 0 : i32
    return %arg0, %c0_i32 : i32, i32
  }
}

</mosaic_0001>

<llo_original>
// kernel: tpu_custom_call.1
$region0: #{tpu_custom_call.1}
  #allocation0 [shape = 'u32[]', space=smem, size = 0x4, offset = 0x4, fixed_abs, tag = 'smem constant byte address 0x4 - core index']
  #allocation1 [shape = 'u32[144,128]{1,0:T(1,128)}', space=vmem, size = 0x12000, scoped, tag = 'internal scratch']
  #allocation2 [shape = 'f32[16,128]{1,0:T(8,128)}', space=vmem, size = 0x2000, scoped, tag = 'scratch operand']
  %s0 = inlined_call_operand.hbm [shape: bf16[16,128], index: 0, kind: input, shape index: {}]
  %s1 = inlined_call_operand.hbm [shape: bf16[128,256], index: 1, kind: input, shape index: {}]
  %s2 = inlined_call_operand.hbm [shape: bf16[256,128], index: 2, kind: input, shape index: {}]
  %s3 = inlined_call_operand.hbm [shape: bf16[16,128], index: 3, kind: output, shape index: {}]
  %s4 = sld [smem:[#allocation0]]
  $region46: #{tpu_custom_call.1} parent=0
    _
  %s6 = ssub.s32 1, %s4
  %s7 = scalar_select 0, %s6, %s4
  $region1: #{tpu_custom_call.1} parent=0
    #allocation3 [shape = 'u8[4096]{0}', space=vmem, size = 0x1000, scoped, tag = 'input window, operand 0, single buffered']
    #allocation4 [shape = 's32[1]{0}', space=sflag, size = 0x4, scoped, tag = 'scoped memory for tpu_custom_call.1']
    #allocation5 [shape = 's32[1]{0}', space=sflag, size = 0x4, scoped, tag = 'scoped memory for tpu_custom_call.1']
    #allocation6 [shape = 'u8[65536]{0}', space=vmem, size = 0x10000, scoped, tag = 'input window, operand 1, single buffered']
    #allocation7 [shape = 's32[1]{0}', space=sflag, size = 0x4, scoped, tag = 'scoped memory for tpu_custom_call.1']
    #allocation8 [shape = 'u8[65536]{0}', space=vmem, size = 0x10000, scoped, tag = 'input window, operand 2, single buffered']
    #allocation9 [shape = 'u8[4096]{0}', space=vmem, size = 0x1000, scoped, tag = 'output window, operand 0, single buffered']
    %8 = vsyncpa [#allocation4], 0
    %9 = vsyncpa [#allocation7], 0
    %10 = vsyncpa [#allocation5], 0
    // Predicated region
    $region2: #{tpu_custom_call.1} parent=1 // pred_check
      _
    $region3: #{tpu_custom_call.1} parent=1 // pred_check_branch
      %12 = sbr.rel (0) target = $region5
    $region4: #{tpu_custom_call.1} parent=1 // pred_region
      %s14 = ssub.s32 128, 128
      %15 = vsyncadd [#allocation4], %s14
      %s16 = sshll.u32 [#allocation3], 4
      %s17 = int_to_ptr.vmem [resolvable:$true] %s16
      %22 = dma.hbm_to_vmem [thread:$0]  %s0, 128, %s17, [#allocation4], 64, 64, 4
    $region5: #{tpu_custom_call.1} parent=1 // pred_fallthru
      _
    // Predicated region
    $region6: #{tpu_custom_call.1} parent=1 // pred_check
      _
    $region7: #{tpu_custom_call.1} parent=1 // pred_check_branch
      %24 = sbr.rel (0) target = $region9
    $region8: #{tpu_custom_call.1} parent=1 // pred_region
      %s26 = ssub.s32 2048, 2048
      %27 = vsyncadd [#allocation7], %s26
      %s28 = sshll.u32 [#allocation6], 4
      %s29 = int_to_ptr.vmem [resolvable:$true] %s28
      %34 = dma.hbm_to_vmem [thread:$0]  %s1, 2048, %s29, [#allocation7], 128, 128, 8
    $region9: #{tpu_custom_call.1} parent=1 // pred_fallthru
      _
    // Predicated region
    $region10: #{tpu_custom_call.1} parent=1 // pred_check
      _
    $region11: #{tpu_custom_call.1} parent=1 // pred_check_branch
      %36 = sbr.rel (0) target = $region13
    $region12: #{tpu_custom_call.1} parent=1 // pred_region
      %s38 = ssub.s32 2048, 2048
      %39 = vsyncadd [#allocation7], %s38
      %s40 = sshll.u32 [#allocation8], 4
      %s41 = int_to_ptr.vmem [resolvable:$true] %s40
      %46 = dma.hbm_to_vmem [thread:$0]  %s2, 2048, %s41, [#allocation7], 64, 64, 4
    $region13: #{tpu_custom_call.1} parent=1 // pred_fallthru
      _
    // Predicated region
    $region14: #{tpu_custom_call.1} parent=1 // pred_check
      _
    $region15: #{tpu_custom_call.1} parent=1 // pred_check_branch
      %48 = sbr.rel (0) target = $region17
    $region16: #{tpu_custom_call.1} parent=1 // pred_region
      %49 = dma.done [#allocation4], 128
    $region17: #{tpu_custom_call.1} parent=1 // pred_fallthru
      _
    // Predicated region
    $region18: #{tpu_custom_call.1} parent=1 // pred_check
      _
    $region19: #{tpu_custom_call.1} parent=1 // pred_check_branch
      %51 = sbr.rel (0) target = $region21
    $region20: #{tpu_custom_call.1} parent=1 // pred_region
      %52 = dma.done [#allocation7], 2048
    $region21: #{tpu_custom_call.1} parent=1 // pred_fallthru
      _
    // Predicated region
    $region22: #{tpu_custom_call.1} parent=1 // pred_check
      _
    $region23: #{tpu_custom_call.1} parent=1 // pred_check_branch
      %54 = sbr.rel (0) target = $region25
    $region24: #{tpu_custom_call.1} parent=1 // pred_region
      %55 = dma.done [#allocation7], 2048
    $region25: #{tpu_custom_call.1} parent=1 // pred_fallthru
      _
    %v57 = vld [vmem:[#allocation3] sm:$0xf]
    %v58 = vld [vmem:[#allocation3 + $0x4] sm:$0xf]
    %v59 = vld [vmem:[#allocation6] sm:$0xff]
    %v60 = vld [vmem:[#allocation6 + $0x8] sm:$0xff]
    %v61 = vld [vmem:[#allocation6 + $0x10] sm:$0xff]
    %v62 = vld [vmem:[#allocation6 + $0x18] sm:$0xff]
    %v63 = vld [vmem:[#allocation6 + $0x20] sm:$0xff]
    %v64 = vld [vmem:[#allocation6 + $0x28] sm:$0xff]
    %v65 = vld [vmem:[#allocation6 + $0x30] sm:$0xff]
    %v66 = vld [vmem:[#allocation6 + $0x38] sm:$0xff]
    %v67 = vld [vmem:[#allocation6 + $0x40] sm:$0xff]
    %v68 = vld [vmem:[#allocation6 + $0x48] sm:$0xff]
    %v69 = vld [vmem:[#allocation6 + $0x50] sm:$0xff]
    %v70 = vld [vmem:[#allocation6 + $0x58] sm:$0xff]
    %v71 = vld [vmem:[#allocation6 + $0x60] sm:$0xff]
    %v72 = vld [vmem:[#allocation6 + $0x68] sm:$0xff]
    %v73 = vld [vmem:[#allocation6 + $0x70] sm:$0xff]
    %v74 = vld [vmem:[#allocation6 + $0x78] sm:$0xff]
    %v77 = vunpack.c.l.b16 %v57
    %v78 = vunpack.c.l.b16 %v58
    %v79 = vpack.c.b16 %v78, %v77
    %v97 = vunpack.c.l.b16 %v59
    %v98 = vunpack.c.h.b16 %v59
    %v99 = vunpack.c.l.b16 %v60
    %v100 = vunpack.c.h.b16 %v60
    %v101 = vunpack.c.l.b16 %v61
    %v102 = vunpack.c.h.b16 %v61
    %v103 = vunpack.c.l.b16 %v62
    %v104 = vunpack.c.h.b16 %v62
    %v105 = vunpack.c.l.b16 %v63
    %v106 = vunpack.c.h.b16 %v63
    %v107 = vunpack.c.l.b16 %v64
    %v108 = vunpack.c.h.b16 %v64
    %v109 = vunpack.c.l.b16 %v65
    %v110 = vunpack.c.h.b16 %v65
    %v111 = vunpack.c.l.b16 %v66
    %v112 = vunpack.c.h.b16 %v66
    %v113 = vunpack.c.l.b16 %v67
    %v114 = vunpack.c.h.b16 %v67
    %v115 = vunpack.c.l.b16 %v68
    %v116 = vunpack.c.h.b16 %v68
    %v117 = vunpack.c.l.b16 %v69
    %v118 = vunpack.c.h.b16 %v69
    %v119 = vunpack.c.l.b16 %v70
    %v120 = vunpack.c.h.b16 %v70
    %v121 = vunpack.c.l.b16 %v71
    %v122 = vunpack.c.h.b16 %v71
    %v123 = vunpack.c.l.b16 %v72
    %v124 = vunpack.c.h.b16 %v72
    %v125 = vunpack.c.l.b16 %v73
    %v126 = vunpack.c.h.b16 %v73
    %v127 = vunpack.c.l.b16 %v74
    %v128 = vunpack.c.h.b16 %v74
    %v129 = vpack.c.b16 %v99, %v97
    %v130 = vpack.c.b16 %v100, %v98
    %v131 = vpack.c.b16 %v103, %v101
    %v132 = vpack.c.b16 %v104, %v102
    %v133 = vpack.c.b16 %v107, %v105
    %v134 = vpack.c.b16 %v108, %v106
    %v135 = vpack.c.b16 %v111, %v109
    %v136 = vpack.c.b16 %v112, %v110
    %v137 = vpack.c.b16 %v115, %v113
    %v138 = vpack.c.b16 %v116, %v114
    %v139 = vpack.c.b16 %v119, %v117
    %v140 = vpack.c.b16 %v120, %v118
    %v141 = vpack.c.b16 %v123, %v121
    %v142 = vpack.c.b16 %v124, %v122
    %v143 = vpack.c.b16 %v127, %v125
    %v144 = vpack.c.b16 %v128, %v126
    %161 = vmatprep.subr.bf16.mxu0 %v130
    %162 = vmatpush1.bf16.msra.mxu0 %v129
    %163 = vmatprep.subr.bf16.mxu0 %v132
    %164 = vmatpush1.bf16.msra.mxu0 %v131
    %165 = vmatprep.subr.bf16.mxu0 %v134
    %166 = vmatpush1.bf16.msra.mxu0 %v133
    %167 = vmatprep.subr.bf16.mxu0 %v136
    %168 = vmatpush1.bf16.msra.mxu0 %v135
    %169 = vmatprep.subr.bf16.mxu0 %v138
    %170 = vmatpush1.bf16.msra.mxu0 %v137
    %171 = vmatprep.subr.bf16.mxu0 %v140
    %172 = vmatpush1.bf16.msra.mxu0 %v139
    %173 = vmatprep.subr.bf16.mxu0 %v142
    %174 = vmatpush1.bf16.msra.mxu0 %v141
    %175 = vmatprep.subr.bf16.mxu0 %v144
    %176 = vmatpush1.bf16.msra.mxu0 %v143
    %177 = vmatprep.subr.bf16.mxu0 0
    %178 = vmatpush1.bf16.msra.mxu0 0
    %179 = vmatprep.subr.bf16.mxu0 0
    %180 = vmatpush1.bf16.msra.mxu0 0
    %181 = vmatprep.subr.bf16.mxu0 0
    %182 = vmatpush1.bf16.msra.mxu0 0
    %183 = vmatprep.subr.bf16.mxu0 0
    %184 = vmatpush1.bf16.msra.mxu0 0
    %185 = vmatprep.subr.bf16.mxu0 0
    %186 = vmatpush1.bf16.msra.mxu0 0
    %187 = vmatprep.subr.bf16.mxu0 0
    %188 = vmatpush1.bf16.msra.mxu0 0
    %189 = vmatprep.subr.bf16.mxu0 0
    %190 = vmatpush1.bf16.msra.mxu0 0
    %191 = vmatprep.subr.bf16.mxu0 0
    %192 = vmatpush1.bf16.msra.mxu0 0
    %193 = vmatprep.mubr.bf16.mxu0 0
    %194 = vmatmul.mubr.bf16.gmra.mrb[0].mxu0 %v79
    %v195 = vpop.f32.mrb[0].mxu0
    %v196 = vadd.f32 0.0, %v195
    %v197 = vpop.f32.mrb[0].mxu0
    %v198 = vadd.f32 0.0, %v197
    %v199 = vpop.f32.mrb[0].mxu0
    %v200 = vadd.f32 0.0, %v199
    %v201 = vpop.f32.mrb[0].mxu0
    %v202 = vadd.f32 0.0, %v201
    %203 = vdwg.mxu0
    %v204 = vmax.f32 %v196, 0.0
    %v205 = vmax.f32 %v198, 0.0
    %v206 = vmax.f32 %v200, 0.0
    %v207 = vmax.f32 %v202, 0.0
    %v208 = vmul.f32 %v204, %v204
    %v209 = vmul.f32 %v205, %v205
    %v210 = vmul.f32 %v206, %v206
    %v211 = vmul.f32 %v207, %v207
    %v212 = vpack.c.bf16 %v210, %v208
    %v213 = vpack.c.bf16 %v211, %v209
    %v214 = vld [vmem:[#allocation8] sm:$0xf]
    %v215 = vld [vmem:[#allocation8 + $0x4] sm:$0xf]
    %v216 = vld [vmem:[#allocation8 + $0x8] sm:$0xf]
    %v217 = vld [vmem:[#allocation8 + $0xc] sm:$0xf]
    %v218 = vld [vmem:[#allocation8 + $0x10] sm:$0xf]
    %v219 = vld [vmem:[#allocation8 + $0x14] sm:$0xf]
    %v220 = vld [vmem:[#allocation8 + $0x18] sm:$0xf]
    %v221 = vld [vmem:[#allocation8 + $0x1c] sm:$0xf]
    %v222 = vld [vmem:[#allocation8 + $0x20] sm:$0xf]
    %v223 = vld [vmem:[#allocation8 + $0x24] sm:$0xf]
    %v224 = vld [vmem:[#allocation8 + $0x28] sm:$0xf]
    %v225 = vld [vmem:[#allocation8 + $0x2c] sm:$0xf]
    %v226 = vld [vmem:[#allocation8 + $0x30] sm:$0xf]
    %v227 = vld [vmem:[#allocation8 + $0x34] sm:$0xf]
    %v228 = vld [vmem:[#allocation8 + $0x38] sm:$0xf]
    %v229 = vld [vmem:[#allocation8 + $0x3c] sm:$0xf]
    %v230 = vld [vmem:[#allocation8 + $0x40] sm:$0xf]
    %v231 = vld [vmem:[#allocation8 + $0x44] sm:$0xf]
    %v232 = vld [vmem:[#allocation8 + $0x48] sm:$0xf]
    %v233 = vld [vmem:[#allocation8 + $0x4c] sm:$0xf]
    %v234 = vld [vmem:[#allocation8 + $0x50] sm:$0xf]
    %v235 = vld [vmem:[#allocation8 + $0x54] sm:$0xf]
    %v236 = vld [vmem:[#allocation8 + $0x58] sm:$0xf]
    %v237 = vld [vmem:[#allocation8 + $0x5c] sm:$0xf]
    %v238 = vld [vmem:[#allocation8 + $0x60] sm:$0xf]
    %v239 = vld [vmem:[#allocation8 + $0x64] sm:$0xf]
    %v240 = vld [vmem:[#allocation8 + $0x68] sm:$0xf]
    %v241 = vld [vmem:[#allocation8 + $0x6c] sm:$0xf]
    %v242 = vld [vmem:[#allocation8 + $0x70] sm:$0xf]
    %v243 = vld [vmem:[#allocation8 + $0x74] sm:$0xf]
    %v244 = vld [vmem:[#allocation8 + $0x78] sm:$0xf]
    %v245 = vld [vmem:[#allocation8 + $0x7c] sm:$0xf]
    %v278 = vunpack.c.l.b16 %v214
    %v279 = vunpack.c.l.b16 %v215
    %v280 = vunpack.c.l.b16 %v216
    %v281 = vunpack.c.l.b16 %v217
    %v282 = vunpack.c.l.b16 %v218
    %v283 = vunpack.c.l.b16 %v219
    %v284 = vunpack.c.l.b16 %v220
    %v285 = vunpack.c.l.b16 %v221
    %v286 = vunpack.c.l.b16 %v222
    %v287 = vunpack.c.l.b16 %v223
    %v288 = vunpack.c.l.b16 %v224
    %v289 = vunpack.c.l.b16 %v225
    %v290 = vunpack.c.l.b16 %v226
    %v291 = vunpack.c.l.b16 %v227
    %v292 = vunpack.c.l.b16 %v228
    %v293 = vunpack.c.l.b16 %v229
    %v294 = vunpack.c.l.b16 %v230
    %v295 = vunpack.c.l.b16 %v231
    %v296 = vunpack.c.l.b16 %v232
    %v297 = vunpack.c.l.b16 %v233
    %v298 = vunpack.c.l.b16 %v234
    %v299 = vunpack.c.l.b16 %v235
    %v300 = vunpack.c.l.b16 %v236
    %v301 = vunpack.c.l.b16 %v237
    %v302 = vunpack.c.l.b16 %v238
    %v303 = vunpack.c.l.b16 %v239
    %v304 = vunpack.c.l.b16 %v240
    %v305 = vunpack.c.l.b16 %v241
    %v306 = vunpack.c.l.b16 %v242
    %v307 = vunpack.c.l.b16 %v243
    %v308 = vunpack.c.l.b16 %v244
    %v309 = vunpack.c.l.b16 %v245
    %v310 = vpack.c.b16 %v279, %v278
    %v311 = vpack.c.b16 %v281, %v280
    %v312 = vpack.c.b16 %v283, %v282
    %v313 = vpack.c.b16 %v285, %v284
    %v314 = vpack.c.b16 %v287, %v286
    %v315 = vpack.c.b16 %v289, %v288
    %v316 = vpack.c.b16 %v291, %v290
    %v317 = vpack.c.b16 %v293, %v292
    %v318 = vpack.c.b16 %v295, %v294
    %v319 = vpack.c.b16 %v297, %v296
    %v320 = vpack.c.b16 %v299, %v298
    %v321 = vpack.c.b16 %v301, %v300
    %v322 = vpack.c.b16 %v303, %v302
    %v323 = vpack.c.b16 %v305, %v304
    %v324 = vpack.c.b16 %v307, %v306
    %v325 = vpack.c.b16 %v309, %v308
    %342 = vmatprep.subr.bf16.mxu0 0
    %343 = vmatpush1.bf16.msra.mxu0 %v310
    %344 = vmatprep.subr.bf16.mxu0 0
    %345 = vmatpush1.bf16.msra.mxu0 %v311
    %346 = vmatprep.subr.bf16.mxu0 0
    %347 = vmatpush1.bf16.msra.mxu0 %v312
    %348 = vmatprep.subr.bf16.mxu0 0
    %349 = vmatpush1.bf16.msra.mxu0 %v313
    %350 = vmatprep.subr.bf16.mxu0 0
    %351 = vmatpush1.bf16.msra.mxu0 %v314
    %352 = vmatprep.subr.bf16.mxu0 0
    %353 = vmatpush1.bf16.msra.mxu0 %v315
    %354 = vmatprep.subr.bf16.mxu0 0
    %355 = vmatpush1.bf16.msra.mxu0 %v316
    %356 = vmatprep.subr.bf16.mxu0 0
    %357 = vmatpush1.bf16.msra.mxu0 %v317
    %358 = vmatprep.subr.bf16.mxu0 0
    %359 = vmatpush1.bf16.msra.mxu0 %v318
    %360 = vmatprep.subr.bf16.mxu0 0
    %361 = vmatpush1.bf16.msra.mxu0 %v319
    %362 = vmatprep.subr.bf16.mxu0 0
    %363 = vmatpush1.bf16.msra.mxu0 %v320
    %364 = vmatprep.subr.bf16.mxu0 0
    %365 = vmatpush1.bf16.msra.mxu0 %v321
    %366 = vmatprep.subr.bf16.mxu0 0
    %367 = vmatpush1.bf16.msra.mxu0 %v322
    %368 = vmatprep.subr.bf16.mxu0 0
    %369 = vmatpush1.bf16.msra.mxu0 %v323
    %370 = vmatprep.subr.bf16.mxu0 0
    %371 = vmatpush1.bf16.msra.mxu0 %v324
    %372 = vmatprep.subr.bf16.mxu0 0
    %373 = vmatpush1.bf16.msra.mxu0 %v325
    %374 = vmatprep.mubr.bf16.mxu0 %v213
    %375 = vmatmul.mubr.bf16.gmra.mrb[0].mxu0 %v212
    %v376 = vpop.f32.mrb[0].mxu0
    %v377 = vadd.f32 0.0, %v376
    %v378 = vpop.f32.mrb[0].mxu0
    %v379 = vpop.f32.mrb[0].mxu0
    %v380 = vadd.f32 0.0, %v379
    %v381 = vpop.f32.mrb[0].mxu0
    %382 = vdwg.mxu0
    %p383 = scmp.eq.s32.totalorder 0, 0
    // Predicated region
    $region26: #{tpu_custom_call.1} parent=1 // pred_check
      %p384 = pneg %p383
    $region27: #{tpu_custom_call.1} parent=1 // pred_check_branch
      %386 = sbr.rel (%p384) target = $region29
    $region28: #{tpu_custom_call.1} parent=1 // pred_region
      %387 = vst [vmem:[#allocation2] sm:$0xff] %v377
      %388 = vst [vmem:[#allocation2 + $0x8] sm:$0xff] %v380
    $region29: #{tpu_custom_call.1} parent=1 // pred_fallthru
      _
    %p389 = scmp.gt.s32.totalorder 0, 0
    // Predicated region
    $region30: #{tpu_custom_call.1} parent=1 // pred_check
      %p390 = pneg %p389
    $region31: #{tpu_custom_call.1} parent=1 // pred_check_branch
      %392 = sbr.rel (%p390) target = $region33
    $region32: #{tpu_custom_call.1} parent=1 // pred_region
      %v393 = vld [vmem:[#allocation2] sm:$0xff]
      %v394 = vld [vmem:[#allocation2 + $0x8] sm:$0xff]
      %v395 = vadd.f32 %v393, %v377
      %v396 = vadd.f32 %v394, %v380
      %397 = vst [vmem:[#allocation2] sm:$0xff] %v395
      %398 = vst [vmem:[#allocation2 + $0x8] sm:$0xff] %v396
    $region33: #{tpu_custom_call.1} parent=1 // pred_fallthru
      _
    // Predicated region
    $region34: #{tpu_custom_call.1} parent=1 // pred_check
      %p399 = pneg %p383
    $region35: #{tpu_custom_call.1} parent=1 // pred_check_branch
      %401 = sbr.rel (%p399) target = $region37
    $region36: #{tpu_custom_call.1} parent=1 // pred_region
      %v402 = vld [vmem:[#allocation2] sm:$0xff]
      %v403 = vld [vmem:[#allocation2 + $0x8] sm:$0xff]
      %v404 = vpack.c.bf16 %v403, %v402
      %v406 = vunpack.c.l.b16 %v404
      %v407 = vunpack.c.h.b16 %v404
      %v408 = vpack.c.b16 %v406, %v406
      %v409 = vpack.c.b16 %v407, %v407
      %412 = vst [vmem:[#allocation9] sm:$0xf] %v408
      %413 = vst [vmem:[#allocation9 + $0x4] sm:$0xf] %v409
    $region37: #{tpu_custom_call.1} parent=1 // pred_fallthru
      _
    // Predicated region
    $region38: #{tpu_custom_call.1} parent=1 // pred_check
      _
    $region39: #{tpu_custom_call.1} parent=1 // pred_check_branch
      %415 = sbr.rel (0) target = $region41
    $region40: #{tpu_custom_call.1} parent=1 // pred_region
      %s417 = ssub.s32 128, 128
      %418 = vsyncadd [#allocation5], %s417
      %s419 = sshll.u32 [#allocation9], 4
      %s420 = int_to_ptr.vmem [resolvable:$true] %s419
      %425 = dma.vmem_to_hbm [thread:$0]  %s420, 128, %s3, [#allocation5], 64, 64, 4
    $region41: #{tpu_custom_call.1} parent=1 // pred_fallthru
      _
    // Predicated region
    $region42: #{tpu_custom_call.1} parent=1 // pred_check
      _
    $region43: #{tpu_custom_call.1} parent=1 // pred_check_branch
      %427 = sbr.rel (0) target = $region45
    $region44: #{tpu_custom_call.1} parent=1 // pred_region
      %428 = dma.done [#allocation5], 128
    $region45: #{tpu_custom_call.1} parent=1 // pred_fallthru
      _
    %429 = vsyncpa [#allocation4], 1
    %430 = vsyncpa [#allocation7], 1
    %431 = vsyncpa [#allocation5], 1

</llo_original>
